<compile_context>
chip_gen: v7x
topology: tpu7x:2x2x1
jax: 0.10.0
libtpu: 0.0.40
codegen_flags: <defaults>
</compile_context>

<pallas_src>
import functools
import math

import jax
import jax.numpy as jnp
from jax import lax
from jax.experimental import pallas as pl
from jax.experimental.pallas import tpu as pltpu

_EPS = 1e-12  # F.normalize default eps (clamps the norm)


def _norm_linear_kernel(x_ref, w_ref, inv_x_ref, inv_w_ref, o_ref, acc_ref,
                        *, cast_to_bf16: bool):
    k = pl.program_id(2)

    @pl.when(k == 0)
    def _init():
        acc_ref[...] = jnp.zeros_like(acc_ref)

    x = x_ref[...]          # (tm, tk)
    w = w_ref[...]          # (tn, tk)
    if cast_to_bf16:
        # Opt-in: f32 callers can run the MXU in its native bf16 mode
        # (~3x fewer MXU passes); norm scaling stays in f32.
        x = x.astype(jnp.bfloat16)
        w = w.astype(jnp.bfloat16)

    # Raw partial matmul on the MXU, contracting over the K axis of both tiles
    # (no materialized transpose of the (out, in) weight).
    acc_ref[...] += lax.dot_general(
        x, w,
        dimension_numbers=(((1,), (1,)), ((), ())),
        preferred_element_type=jnp.float32)

    @pl.when(k == pl.num_programs(2) - 1)
    def _finalize():
        # Single scale at the end: (tm, 1) row norms x (1, tn) column norms.
        o_ref[...] = (acc_ref[...] * inv_x_ref[...] * inv_w_ref[...]).astype(
            o_ref.dtype)


def _round_up(v: int, m: int) -> int:
    return ((v + m - 1) // m) * m


def _sublane_multiple(dtype) -> int:
    # f32 -> 8, bf16 -> 16, int8/fp8 -> 32 sublanes per packed vreg.
    return max(8, 32 // jnp.dtype(dtype).itemsize)


def _vmem_limit_bytes() -> int:
    # Derive the scoped-VMEM limit from the actual chip instead of hardcoding:
    # leave ~25% of physical VMEM for compiler-internal scratch, cap the limit
    # on 128-MiB parts.  Working set at default tiles is ~11 MiB.
    try:
        cap = int(getattr(pltpu.get_tpu_info(), "vmem_capacity_bytes",
                          64 * 1024 * 1024))
    except Exception:
        cap = 64 * 1024 * 1024
    return min((cap * 3) // 4, 100 * 1024 * 1024)


@functools.partial(jax.jit,
                   static_argnames=("tm", "tn", "tk", "bf16_matmul"))
def norm_linear(x: jax.Array, weight: jax.Array, *, tm: int = 512,
                tn: int = 512, tk: int = 1024,
                bf16_matmul: bool = False) -> jax.Array:
    """x: (batch, in_features), weight: (out_features, in_features)."""
    batch, in_features = x.shape
    out_features, in_features_w = weight.shape
    assert in_features == in_features_w

    # ---- Hoisted per-row norms (one fused reduce each, done in plain JAX).
    eps2 = jnp.float32(_EPS * _EPS)
    xf = x.astype(jnp.float32)
    wf = weight.astype(jnp.float32)
    inv_x = lax.rsqrt(jnp.maximum(jnp.sum(xf * xf, axis=1, keepdims=True),
                                  eps2))                       # (batch, 1)
    inv_w = lax.rsqrt(jnp.maximum(jnp.sum(wf * wf, axis=1), eps2))[None, :]
                                                               # (1, out)

    # ---- Tile clamping: lane dims multiples of 128, sublane dims dtype-aware.
    # For small batch we keep tm at the rounded batch (partial-fill LHS rows
    # stream through the systolic array in proportionally fewer pushes).
    sub = _sublane_multiple(x.dtype)
    tm = _round_up(min(tm, _round_up(batch, sub)), sub)
    tn = _round_up(min(tn, _round_up(out_features, 128)), 128)
    tk = _round_up(min(tk, _round_up(in_features, 128)), 128)

    mp = _round_up(batch, tm)
    np_ = _round_up(out_features, tn)
    kp = _round_up(in_features, tk)

    # v7x megacore: if the i axis collapses to one block, try to keep >= 2
    # j blocks (256-aligned for the 2x256^2 MXU) so both TensorCores get work.
    if mp // tm == 1 and np_ // tn == 1 and np_ >= 512:
        tn = _round_up(pl.cdiv(np_, 2), 256)
        np_ = _round_up(out_features, tn)

    # Zero-padding is exact: zero rows/columns add nothing to the dot products
    # and padded outputs are sliced off below.
    # TODO(synk): for bandwidth-bound ragged-K shapes, mask the K tail inside
    # the kernel (prefetched valid_k scalar) instead of materializing padded
    # copies of x and weight in HBM.
    if (mp, kp) != (batch, in_features):
        x = jnp.pad(x, ((0, mp - batch), (0, kp - in_features)))
    if (np_, kp) != (out_features, in_features):
        weight = jnp.pad(weight,
                         ((0, np_ - out_features), (0, kp - in_features)))
    if mp != batch:
        inv_x = jnp.pad(inv_x, ((0, mp - batch), (0, 0)))
    if np_ != out_features:
        inv_w = jnp.pad(inv_w, ((0, 0), (0, np_ - out_features)))

    grid = (mp // tm, np_ // tn, kp // tk)
    cast_to_bf16 = bool(bf16_matmul) and x.dtype == jnp.float32
    kernel = functools.partial(_norm_linear_kernel, cast_to_bf16=cast_to_bf16)

    out = pl.pallas_call(
        kernel,
        out_shape=jax.ShapeDtypeStruct((mp, np_), x.dtype),
        grid_spec=pltpu.PrefetchScalarGridSpec(
            num_scalar_prefetch=0,
            grid=grid,
            in_specs=[
                pl.BlockSpec((tm, tk), lambda i, j, k: (i, k)),   # x
                pl.BlockSpec((tn, tk), lambda i, j, k: (j, k)),   # weight
                pl.BlockSpec((tm, 1), lambda i, j, k: (i, 0)),    # inv_x col
                pl.BlockSpec((1, tn), lambda i, j, k: (0, j)),    # inv_w row
            ],
            out_specs=pl.BlockSpec((tm, tn), lambda i, j, k: (i, j)),
            scratch_shapes=[
                pltpu.VMEM((tm, tn), jnp.float32),   # f32 matmul accumulator
            ],
        ),
        compiler_params=pltpu.CompilerParams(
            dimension_semantics=("parallel", "parallel", "arbitrary"),
            vmem_limit_bytes=_vmem_limit_bytes(),
        ),
    )(x, weight, inv_x, inv_w)

    return out[:batch, :out_features]


def init_norm_linear_weight(key, in_features: int, out_features: int) -> jax.Array:
    # nn.init.kaiming_uniform_(weight, a=sqrt(5)) on a (out, in) tensor:
    #   gain = sqrt(2 / (1 + a^2)) = sqrt(1/3);  bound = gain*sqrt(3/fan_in)
    bound = 1.0 / math.sqrt(in_features)
    return jax.random.uniform(
        key, (out_features, in_features), dtype=jnp.float32,
        minval=-bound, maxval=bound)


def _reference(x, w):
    x_n = x / jnp.maximum(jnp.linalg.norm(x, axis=1, keepdims=True), _EPS)
    w_n = w / jnp.maximum(jnp.linalg.norm(w, axis=1, keepdims=True), _EPS)
    return x_n @ w_n.T


if __name__ == "__main__":
    key = jax.random.PRNGKey(0)
    k1, k2, k3, k4, k5, k6 = jax.random.split(key, 6)

    # Case 1: tiny shapes, single grid step (like the module's toy use).
    x1 = jax.random.normal(k1, (8, 32), dtype=jnp.float32)
    w1 = init_norm_linear_weight(k2, 32, 16)
    out1 = jax.block_until_ready(norm_linear(x1, w1))
    ref1 = _reference(x1, w1)
    assert out1.shape == (8, 16)
    assert jnp.allclose(out1, ref1, atol=1e-4, rtol=1e-4), \
        float(jnp.max(jnp.abs(out1 - ref1)))

    # Case 2: exercises the (M, N, K) grid, K-accumulation and edge padding.
    x2 = jax.random.normal(k3, (24, 320), dtype=jnp.float32)
    w2 = init_norm_linear_weight(k4, 320, 200)
    out2 = jax.block_until_ready(norm_linear(x2, w2, tm=8, tn=128, tk=128))
    ref2 = _reference(x2, w2)
    assert out2.shape == (24, 200)
    assert jnp.allclose(out2, ref2, atol=1e-4, rtol=1e-4), \
        float(jnp.max(jnp.abs(out2 - ref2)))

    # Case 3: bf16 inputs exercise the dtype-aware sublane rounding.
    x3 = jax.random.normal(k5, (24, 256), dtype=jnp.float32).astype(jnp.bfloat16)
    w3 = init_norm_linear_weight(k6, 256, 128).astype(jnp.bfloat16)
    out3 = jax.block_until_ready(norm_linear(x3, w3))
    ref3 = _reference(x3.astype(jnp.float32), w3.astype(jnp.float32))
    assert out3.shape == (24, 128)
    assert jnp.allclose(out3.astype(jnp.float32), ref3, atol=2e-2, rtol=2e-2), \
        float(jnp.max(jnp.abs(out3.astype(jnp.float32) - ref3)))

    # Case 4: f32 inputs on the opt-in bf16 MXU path (looser tolerance).
    out4 = jax.block_until_ready(norm_linear(x2, w2, bf16_matmul=True))
    assert out4.shape == (24, 200)
    assert jnp.allclose(out4, ref2, atol=2e-2, rtol=2e-2), \
        float(jnp.max(jnp.abs(out4 - ref2)))

    print("KERNEL_OK")
</pallas_src>

<mosaic_0001>
module attributes {stable_mosaic.version = 11 : i64} {
  func.func @_norm_linear_kernel(%arg0: i32, %arg1: i32, %arg2: i32, %arg3: memref<8x128xf32, #tpu.memory_space<vmem>>, %arg4: memref<128x128xf32, #tpu.memory_space<vmem>>, %arg5: memref<8x1xf32, #tpu.memory_space<vmem>>, %arg6: memref<1x128xf32, #tpu.memory_space<vmem>>, %arg7: memref<8x128xf32, #tpu.memory_space<vmem>>, %arg8: memref<8x128xf32, #tpu.memory_space<vmem>>) attributes {dimension_semantics = [#tpu.dimension_semantics<parallel>, #tpu.dimension_semantics<parallel>, #tpu.dimension_semantics<arbitrary>], iteration_bounds = array<i64: 1, 1, 1>, scalar_prefetch = 0 : i64, scratch_operands = 1 : i64, tpu.core_type = #tpu.core_type<tc>, window_params = [{transform_indices = @transform_0, window_bounds = array<i64: 8, 128>}, {transform_indices = @transform_1, window_bounds = array<i64: 128, 128>}, {transform_indices = @transform_2, window_bounds = array<i64: 8, 1>}, {transform_indices = @transform_3, window_bounds = array<i64: 1, 128>}, {transform_indices = @transform_4, window_bounds = array<i64: 8, 128>}]} {
    %c0_i32 = arith.constant 0 : i32
    %0 = arith.cmpi eq, %arg2, %c0_i32 : i32
    %1 = arith.extui %0 : i1 to i32
    %c0_i32_0 = arith.constant 0 : i32
    %2 = arith.cmpi ne, %1, %c0_i32_0 : i32
    scf.if %2 {
      %cst_10 = arith.constant 0.000000e+00 : f32
      %12 = vector.broadcast %cst_10 : f32 to vector<8x128xf32>
      %c0_11 = arith.constant 0 : index
      %c0_12 = arith.constant 0 : index
      %13 = vector.load %arg8[%c0_11, %c0_12] : memref<8x128xf32, #tpu.memory_space<vmem>>, vector<8x128xf32>
      tpu.vector_store %arg8[%c0_11, %c0_12], %12 {strides = array<i32>} : memref<8x128xf32, #tpu.memory_space<vmem>>, vector<8x128xf32>,
    } else {
    }
    %c0 = arith.constant 0 : index
    %c0_1 = arith.constant 0 : index
    %3 = vector.load %arg3[%c0, %c0_1] : memref<8x128xf32, #tpu.memory_space<vmem>>, vector<8x128xf32>
    %c0_2 = arith.constant 0 : index
    %c0_3 = arith.constant 0 : index
    %4 = vector.load %arg4[%c0_2, %c0_3] : memref<128x128xf32, #tpu.memory_space<vmem>>, vector<128x128xf32>
    %c0_4 = arith.constant 0 : index
    %c0_5 = arith.constant 0 : index
    %5 = vector.load %arg8[%c0_4, %c0_5] : memref<8x128xf32, #tpu.memory_space<vmem>>, vector<8x128xf32>
    %cst = arith.constant dense<0.000000e+00> : vector<8x128xf32>
    %6 = tpu.matmul %3, %4, %cst {dimension_numbers = #tpu.dot_dimension_numbers<[1], [1], [0], [0], [0, 0, 1, 0], [], []>} : vector<8x128xf32>, vector<128x128xf32>, vector<8x128xf32> -> vector<8x128xf32>
    %7 = arith.addf %5, %6 : vector<8x128xf32>
    %c0_6 = arith.constant 0 : index
    %c0_7 = arith.constant 0 : index
    %8 = vector.load %arg8[%c0_6, %c0_7] : memref<8x128xf32, #tpu.memory_space<vmem>>, vector<8x128xf32>
    tpu.vector_store %arg8[%c0_6, %c0_7], %7 {strides = array<i32>} : memref<8x128xf32, #tpu.memory_space<vmem>>, vector<8x128xf32>,
    %c0_i32_8 = arith.constant 0 : i32
    %9 = arith.cmpi eq, %arg2, %c0_i32_8 : i32
    %10 = arith.extui %9 : i1 to i32
    %c0_i32_9 = arith.constant 0 : i32
    %11 = arith.cmpi ne, %10, %c0_i32_9 : i32
    scf.if %11 {
      %c0_10 = arith.constant 0 : index
      %c0_11 = arith.constant 0 : index
      %12 = vector.load %arg8[%c0_10, %c0_11] : memref<8x128xf32, #tpu.memory_space<vmem>>, vector<8x128xf32>
      %c0_12 = arith.constant 0 : index
      %c0_13 = arith.constant 0 : index
      %13 = vector.load %arg5[%c0_12, %c0_13] : memref<8x1xf32, #tpu.memory_space<vmem>>, vector<8x1xf32>
      %14 = vector.broadcast %13 : vector<8x1xf32> to vector<8x128xf32>
      %15 = arith.mulf %12, %14 : vector<8x128xf32>
      %c0_14 = arith.constant 0 : index
      %c0_15 = arith.constant 0 : index
      %16 = vector.load %arg6[%c0_14, %c0_15] : memref<1x128xf32, #tpu.memory_space<vmem>>, vector<1x128xf32>
      %17 = vector.broadcast %16 : vector<1x128xf32> to vector<8x128xf32>
      %18 = arith.mulf %15, %17 : vector<8x128xf32>
      %c0_16 = arith.constant 0 : index
      %c0_17 = arith.constant 0 : index
      %19 = vector.load %arg7[%c0_16, %c0_17] : memref<8x128xf32, #tpu.memory_space<vmem>>, vector<8x128xf32>
      tpu.vector_store %arg7[%c0_16, %c0_17], %18 {strides = array<i32>} : memref<8x128xf32, #tpu.memory_space<vmem>>, vector<8x128xf32>,
    } else {
    }
    return
  }
  func.func @transform_0(%arg0: i32, %arg1: i32, %arg2: i32) -> (i32, i32) {
    %c0_i32 = arith.constant 0 : i32
    return %arg0, %arg2 : i32, i32
  }
  func.func @transform_1(%arg0: i32, %arg1: i32, %arg2: i32) -> (i32, i32) {
    %c0_i32 = arith.constant 0 : i32
    return %arg1, %arg2 : i32, i32
  }
  func.func @transform_2(%arg0: i32, %arg1: i32, %arg2: i32) -> (i32, i32) {
    %c0_i32 = arith.constant 0 : i32
    %c0_i32_0 = arith.constant 0 : i32
    return %arg0, %c0_i32 : i32, i32
  }
  func.func @transform_3(%arg0: i32, %arg1: i32, %arg2: i32) -> (i32, i32) {
    %c0_i32 = arith.constant 0 : i32
    %c0_i32_0 = arith.constant 0 : i32
    return %c0_i32, %arg1 : i32, i32
  }
  func.func @transform_4(%arg0: i32, %arg1: i32, %arg2: i32) -> (i32, i32) {
    %c0_i32 = arith.constant 0 : i32
    return %arg0, %arg1 : i32, i32
  }
}

</mosaic_0001>

<llo_original>
// kernel: norm_linear.1
$region0: #{norm_linear.1}
  #allocation0 [shape = 'u32[]', space=smem, size = 0x4, offset = 0x4, fixed_abs, tag = 'smem constant byte address 0x4 - core index']
  #allocation1 [shape = 'u32[144,128]{1,0:T(1,128)}', space=vmem, size = 0x12000, scoped, tag = 'internal scratch']
  #allocation2 [shape = 'f32[8,128]{1,0:T(8,128)}', space=vmem, size = 0x1000, scoped, tag = 'scratch operand']
  %s0 = inlined_call_operand.vmem [shape: f32[8,128], index: 0, kind: input, shape index: {}]
  %s1 = inlined_call_operand.vmem [shape: f32[128,128], index: 1, kind: input, shape index: {}]
  %s2 = inlined_call_operand.vmem [shape: f32[8,1], index: 2, kind: input, shape index: {}]
  %s3 = inlined_call_operand.vmem [shape: f32[1,128], index: 3, kind: input, shape index: {}]
  %s4 = inlined_call_operand.hbm [shape: f32[8,128], index: 4, kind: output, shape index: {}]
  %s5 = sld [smem:[#allocation0]]
  $region34: #{norm_linear.1} parent=0
    _
  %s7 = ssub.s32 1, %s5
  %s8 = scalar_select 0, %s7, %s5
  $region1: #{norm_linear.1} parent=0
    #allocation3 [shape = 'u8[4096]{0}', space=vmem, size = 0x1000, scoped, tag = 'output window, operand 0, single buffered']
    #allocation4 [shape = 's32[1]{0}', space=sflag, size = 0x4, scoped, tag = 'scoped memory for norm_linear.1']
    %9 = vsyncpa [#allocation4], 0
    // Predicated region
    $region2: #{norm_linear.1} parent=1 // pred_check
      _
    $region3: #{norm_linear.1} parent=1 // pred_check_branch
      %11 = sbr.rel (0) target = $region5
    $region4: #{norm_linear.1} parent=1 // pred_region
      _
    $region5: #{norm_linear.1} parent=1 // pred_fallthru
      _
    // Predicated region
    $region6: #{norm_linear.1} parent=1 // pred_check
      _
    $region7: #{norm_linear.1} parent=1 // pred_check_branch
      %13 = sbr.rel (0) target = $region9
    $region8: #{norm_linear.1} parent=1 // pred_region
      _
    $region9: #{norm_linear.1} parent=1 // pred_fallthru
      _
    // Predicated region
    $region10: #{norm_linear.1} parent=1 // pred_check
      _
    $region11: #{norm_linear.1} parent=1 // pred_check_branch
      %15 = sbr.rel (0) target = $region13
    $region12: #{norm_linear.1} parent=1 // pred_region
      _
    $region13: #{norm_linear.1} parent=1 // pred_fallthru
      _
    // Predicated region
    $region14: #{norm_linear.1} parent=1 // pred_check
      _
    $region15: #{norm_linear.1} parent=1 // pred_check_branch
      %17 = sbr.rel (0) target = $region17
    $region16: #{norm_linear.1} parent=1 // pred_region
      _
    $region17: #{norm_linear.1} parent=1 // pred_fallthru
      _
    %p18 = scmp.eq.s32.totalorder 0, 0
    // Predicated region
    $region18: #{norm_linear.1} parent=1 // pred_check
      %p19 = pneg %p18
    $region19: #{norm_linear.1} parent=1 // pred_check_branch
      %21 = sbr.rel (%p19) target = $region21
    $region20: #{norm_linear.1} parent=1 // pred_region
      %22 = vst [vmem:[#allocation2] sm:$0xff] 0.0
    $region21: #{norm_linear.1} parent=1 // pred_fallthru
      _
    %v23 = vld [vmem:[%s0] sm:$0xff]
    %v24 = vld [vmem:[%s1] sm:$0xff]
    %v25 = vld [vmem:[%s1 + $0x8] sm:$0xff]
    %v26 = vld [vmem:[%s1 + $0x10] sm:$0xff]
    %v27 = vld [vmem:[%s1 + $0x18] sm:$0xff]
    %v28 = vld [vmem:[%s1 + $0x20] sm:$0xff]
    %v29 = vld [vmem:[%s1 + $0x28] sm:$0xff]
    %v30 = vld [vmem:[%s1 + $0x30] sm:$0xff]
    %v31 = vld [vmem:[%s1 + $0x38] sm:$0xff]
    %v32 = vld [vmem:[%s1 + $0x40] sm:$0xff]
    %v33 = vld [vmem:[%s1 + $0x48] sm:$0xff]
    %v34 = vld [vmem:[%s1 + $0x50] sm:$0xff]
    %v35 = vld [vmem:[%s1 + $0x58] sm:$0xff]
    %v36 = vld [vmem:[%s1 + $0x60] sm:$0xff]
    %v37 = vld [vmem:[%s1 + $0x68] sm:$0xff]
    %v38 = vld [vmem:[%s1 + $0x70] sm:$0xff]
    %v39 = vld [vmem:[%s1 + $0x78] sm:$0xff]
    %v40 = vld [vmem:[#allocation2] sm:$0xff]
    %41 = vmatprep.subr.mxu0 0.0
    %42 = vmatpush1.xpose.msra.mxu0 %v24
    %43 = vmatprep.subr.mxu0 0.0
    %44 = vmatpush1.xpose.msra.mxu0 %v25
    %45 = vmatprep.subr.mxu0 0.0
    %46 = vmatpush1.xpose.msra.mxu0 %v26
    %47 = vmatprep.subr.mxu0 0.0
    %48 = vmatpush1.xpose.msra.mxu0 %v27
    %49 = vmatprep.subr.mxu0 0.0
    %50 = vmatpush1.xpose.msra.mxu0 %v28
    %51 = vmatprep.subr.mxu0 0.0
    %52 = vmatpush1.xpose.msra.mxu0 %v29
    %53 = vmatprep.subr.mxu0 0.0
    %54 = vmatpush1.xpose.msra.mxu0 %v30
    %55 = vmatprep.subr.mxu0 0.0
    %56 = vmatpush1.xpose.msra.mxu0 %v31
    %57 = vmatprep.subr.mxu0 0.0
    %58 = vmatpush1.xpose.msra.mxu0 %v32
    %59 = vmatprep.subr.mxu0 0.0
    %60 = vmatpush1.xpose.msra.mxu0 %v33
    %61 = vmatprep.subr.mxu0 0.0
    %62 = vmatpush1.xpose.msra.mxu0 %v34
    %63 = vmatprep.subr.mxu0 0.0
    %64 = vmatpush1.xpose.msra.mxu0 %v35
    %65 = vmatprep.subr.mxu0 0.0
    %66 = vmatpush1.xpose.msra.mxu0 %v36
    %67 = vmatprep.subr.mxu0 0.0
    %68 = vmatpush1.xpose.msra.mxu0 %v37
    %69 = vmatprep.subr.mxu0 0.0
    %70 = vmatpush1.xpose.msra.mxu0 %v38
    %71 = vmatprep.subr.mxu0 0.0
    %72 = vmatpush1.xpose.msra.mxu0 %v39
    %73 = vmatprep.subr.mxu0 0.0
    %74 = vmatpush1.xpose.msra.mxu0 0.0
    %75 = vmatprep.subr.mxu0 0.0
    %76 = vmatpush1.xpose.msra.mxu0 0.0
    %77 = vmatprep.subr.mxu0 0.0
    %78 = vmatpush1.xpose.msra.mxu0 0.0
    %79 = vmatprep.subr.mxu0 0.0
    %80 = vmatpush1.xpose.msra.mxu0 0.0
    %81 = vmatprep.subr.mxu0 0.0
    %82 = vmatpush1.xpose.msra.mxu0 0.0
    %83 = vmatprep.subr.mxu0 0.0
    %84 = vmatpush1.xpose.msra.mxu0 0.0
    %85 = vmatprep.subr.mxu0 0.0
    %86 = vmatpush1.xpose.msra.mxu0 0.0
    %87 = vmatprep.subr.mxu0 0.0
    %88 = vmatpush1.xpose.msra.mxu0 0.0
    %89 = vmatprep.subr.mxu0 0.0
    %90 = vmatpush1.xpose.msra.mxu0 0.0
    %91 = vmatprep.subr.mxu0 0.0
    %92 = vmatpush1.xpose.msra.mxu0 0.0
    %93 = vmatprep.subr.mxu0 0.0
    %94 = vmatpush1.xpose.msra.mxu0 0.0
    %95 = vmatprep.subr.mxu0 0.0
    %96 = vmatpush1.xpose.msra.mxu0 0.0
    %97 = vmatprep.subr.mxu0 0.0
    %98 = vmatpush1.xpose.msra.mxu0 0.0
    %99 = vmatprep.subr.mxu0 0.0
    %100 = vmatpush1.xpose.msra.mxu0 0.0
    %101 = vmatprep.subr.mxu0 0.0
    %102 = vmatpush1.xpose.msra.mxu0 0.0
    %103 = vmatprep.subr.mxu0 0.0
    %104 = vmatpush1.xpose.msra.mxu0 0.0
    %105 = vmatprep.mubr.f32.mxu0 0.0
    %106 = vmatmul.mubr.f32.gmra.mrb[0].mxu0 %v23
    %v107 = vpop.f32.mrb[0].mxu0
    %v108 = vadd.f32 0.0, %v107
    %v109 = vpop.f32.mrb[0].mxu0
    %110 = vdwg.mxu0
    %v111 = vadd.f32 %v40, %v108
    %112 = vst [vmem:[#allocation2] sm:$0xff] %v111
    // Predicated region
    $region22: #{norm_linear.1} parent=1 // pred_check
      %p113 = pneg %p18
    $region23: #{norm_linear.1} parent=1 // pred_check_branch
      %115 = sbr.rel (%p113) target = $region25
    $region24: #{norm_linear.1} parent=1 // pred_region
      %v116 = vld [vmem:[#allocation2] sm:$0xff]
      %v117 = vld [vmem:[%s2] sm:$0xff]
      %119 = vset.pattern.permute.xlu0 0
      %120 = vperm.xlu0 %119, %v117
      %v121 = vpop.permute.xlu0 %120
      %v123 = vmul.f32 %v116, %v121
      %v124 = vld [vmem:[%s3] sm:$0x1]
      %v126 = vlaneseq
      %v127 = vshrl.u32 %v126, 7
      %v128 = vsub.s32 0, %v127
      %v129 = vrot.slane %v124, %v128
      %v131 = vmul.f32 %v123, %v129
      %132 = vst [vmem:[#allocation3] sm:$0xff] %v131
    $region25: #{norm_linear.1} parent=1 // pred_fallthru
      _
    // Predicated region
    $region26: #{norm_linear.1} parent=1 // pred_check
      _
    $region27: #{norm_linear.1} parent=1 // pred_check_branch
      %134 = sbr.rel (0) target = $region29
    $region28: #{norm_linear.1} parent=1 // pred_region
      %s136 = ssub.s32 128, 128
      %137 = vsyncadd [#allocation4], %s136
      %s139 = sshll.u32 [#allocation3], 4
      %s140 = int_to_ptr.vmem [resolvable:$true] %s139
      %142 = dma.vmem_to_hbm [thread:$0]  %s140, 128, %s4, [#allocation4]
    $region29: #{norm_linear.1} parent=1 // pred_fallthru
      _
    // Predicated region
    $region30: #{norm_linear.1} parent=1 // pred_check
      _
    $region31: #{norm_linear.1} parent=1 // pred_check_branch
      %144 = sbr.rel (0) target = $region33
    $region32: #{norm_linear.1} parent=1 // pred_region
      %145 = dma.done [#allocation4], 128
    $region33: #{norm_linear.1} parent=1 // pred_fallthru
      _
    %146 = vsyncpa [#allocation4], 1

</llo_original>
